<compile_context>
chip_gen: v6e
topology: v6e:2x2x1
jax: 0.10.0
libtpu: 0.0.40
codegen_flags: <defaults>
</compile_context>

<pallas_src>
import functools

import jax
import jax.numpy as jnp
from jax.experimental import pallas as pl
from jax.experimental.pallas import tpu as pltpu


def _pool_kernel(xr_ref, pooled_ref, acc_ref, max_ref, *, pool_k):
    """Reduce over the pool_k unrolled window offsets (runs once, not per cutout).

    xr_ref     : VMEM (1, C, L)   window offset k of the image, lane-dense L=CS*CS
    pooled_ref : VMEM (C, L) f32  (avg_pool + max_pool) / 2
    acc/max    : VMEM (C, L) f32  running sum / running max scratch
    """
    k = pl.program_id(0)
    v = xr_ref[0].astype(jnp.float32)

    @pl.when(k == 0)
    def _():
        acc_ref[...] = v
        max_ref[...] = v

    @pl.when(k > 0)
    def _():
        acc_ref[...] = acc_ref[...] + v
        max_ref[...] = jnp.maximum(max_ref[...], v)

    @pl.when(k == pool_k - 1)
    def _():
        pooled_ref[...] = (acc_ref[...] * (1.0 / pool_k) + max_ref[...]) * 0.5


def _add_noise_kernel(facs_ref, pooled_ref, noise_ref, o_ref, *, block):
    """out[b] = pooled + facs[i*block + b] * noise[b] for a block of cutouts.

    facs_ref   : SMEM (cutn,) f32      per-cutout noise scale
    pooled_ref : VMEM (C, L) f32       grid-invariant (constant index_map -> fetched once)
    noise_ref  : VMEM (block, C, L)    gaussian noise for this block of cutouts
    o_ref      : VMEM (block, C, L)    output cutouts
    """
    i = pl.program_id(0)
    pooled = pooled_ref[...]                       # hoisted out of the unrolled loop
    for b in range(block):                         # short, fully unrolled
        fac = facs_ref[i * block + b]              # scalar from SMEM
        o_ref[b] = (pooled + fac * noise_ref[b].astype(jnp.float32)).astype(o_ref.dtype)


def _pick_cutout_block(cutn, c, l, noise_bytes, out_bytes, budget_bytes):
    """Largest divisor of cutn (<= 8) whose double-buffered VMEM tiles fit the budget."""
    c_pad = -(-c // 8) * 8                         # sublane padding of the (C, L) tile
    best = 1
    for b in range(1, min(cutn, 8) + 1):
        if cutn % b:
            continue
        need = 2 * b * c_pad * l * (noise_bytes + out_bytes)   # noise + out, double-buffered
        need += 2 * c_pad * l * 4                              # pooled (f32), double-buffered
        if need <= budget_bytes:
            best = b
    return best


def make_cutouts(x, facs, noise, *, cut_size, cutn):
    """x: (1, C, H, W); facs: (cutn,) f32; noise: (cutn, C, cut_size, cut_size)."""
    N, C, H, W = x.shape
    assert N == 1, "MakeCutouts noise broadcast assumes a single input image"
    assert H % cut_size == 0 and W % cut_size == 0, "adaptive pool == uniform pool only then"
    kh, kw = H // cut_size, W // cut_size
    pool_k = kh * kw
    L = cut_size * cut_size                        # lane-dense trailing axis

    # Glue (one-time pass over the image): unroll window offsets onto a leading
    # axis and flatten the output tile: xr[dh*kw+dw, c, i*CS+j] = x[0, c, i*kh+dh, j*kw+dw].
    xr = x[0].reshape(C, cut_size, kh, cut_size, kw)
    xr = jnp.transpose(xr, (2, 4, 0, 1, 3)).reshape(pool_k, C, L)

    # --- Kernel 1: pooled = (avg_pool + max_pool) / 2, computed exactly once. ---
    pooled = pl.pallas_call(
        functools.partial(_pool_kernel, pool_k=pool_k),
        out_shape=jax.ShapeDtypeStruct((C, L), jnp.float32),
        grid=(pool_k,),
        in_specs=[pl.BlockSpec((1, C, L), lambda k: (k, 0, 0))],
        out_specs=pl.BlockSpec((C, L), lambda k: (0, 0)),
        scratch_shapes=[pltpu.VMEM((C, L), jnp.float32),
                        pltpu.VMEM((C, L), jnp.float32)],
        compiler_params=pltpu.CompilerParams(dimension_semantics=("arbitrary",)),
    )(xr)

    # --- Kernel 2: broadcast pooled to cutn cutouts + per-cutout scaled noise. ---
    noise_flat = noise.reshape(cutn, C, L)
    B = _pick_cutout_block(
        cutn, C, L,
        noise_bytes=noise_flat.dtype.itemsize,
        out_bytes=x.dtype.itemsize,
        budget_bytes=28 * 1024 * 1024,
    )

    out = pl.pallas_call(
        functools.partial(_add_noise_kernel, block=B),
        out_shape=jax.ShapeDtypeStruct((cutn, C, L), x.dtype),
        grid=(cutn // B,),
        in_specs=[
            pl.BlockSpec(memory_space=pltpu.MemorySpace.SMEM),        # facs
            pl.BlockSpec((C, L), lambda i: (0, 0)),                   # pooled (grid-invariant)
            pl.BlockSpec((B, C, L), lambda i: (i, 0, 0)),             # noise block
        ],
        out_specs=pl.BlockSpec((B, C, L), lambda i: (i, 0, 0)),
        compiler_params=pltpu.CompilerParams(
            dimension_semantics=("parallel",),                        # megacore-safe: no init scratch
            vmem_limit_bytes=32 * 1024 * 1024,                        # explicit budget (v5e/v7x safe)
        ),
    )(facs, pooled, noise_flat)

    return out.reshape(cutn, C, cut_size, cut_size)


def _reference(x, facs, noise, *, cut_size, cutn):
    """Pure-JAX reference matching the PyTorch forward (augs == identity)."""
    N, C, H, W = x.shape
    kh, kw = H // cut_size, W // cut_size
    xr = x.reshape(N, C, cut_size, kh, cut_size, kw)
    avg = xr.mean(axis=(3, 5))
    mx = xr.max(axis=(3, 5))
    cutout = (avg + mx) / 2.0                               # (1, C, CS, CS)
    batch = jnp.concatenate([cutout] * cutn, axis=0)        # (cutn, C, CS, CS)
    return batch + facs[:, None, None, None] * noise


if __name__ == "__main__":
    key = jax.random.PRNGKey(0)
    k_x, k_f, k_n = jax.random.split(key, 3)

    # Small shapes consistent with the module (real: cut_size=224, cutn=32).
    N, C, H, W = 1, 3, 16, 16
    cut_size, cutn, noise_fac = 8, 8, 0.1

    x = jax.random.normal(k_x, (N, C, H, W), dtype=jnp.float32)
    facs = jax.random.uniform(k_f, (cutn,), minval=0.0, maxval=noise_fac,
                              dtype=jnp.float32)
    noise = jax.random.normal(k_n, (cutn, C, cut_size, cut_size), dtype=jnp.float32)

    out = make_cutouts(x, facs, noise, cut_size=cut_size, cutn=cutn)
    out = jax.block_until_ready(out)

    ref = _reference(x, facs, noise, cut_size=cut_size, cutn=cutn)
    assert out.shape == (cutn * N, C, cut_size, cut_size)
    assert jnp.allclose(out, ref, atol=1e-5, rtol=1e-5)

    print("KERNEL_OK")
</pallas_src>

<mosaic_0001>
module attributes {stable_mosaic.version = 11 : i64} {
  func.func @_pool_kernel(%arg0: i32, %arg1: memref<1x3x64xf32, #tpu.memory_space<vmem>>, %arg2: memref<3x64xf32, #tpu.memory_space<vmem>>, %arg3: memref<3x64xf32, #tpu.memory_space<vmem>>, %arg4: memref<3x64xf32, #tpu.memory_space<vmem>>) attributes {dimension_semantics = [#tpu.dimension_semantics<arbitrary>], iteration_bounds = array<i64: 4>, scalar_prefetch = 0 : i64, scratch_operands = 2 : i64, tpu.core_type = #tpu.core_type<tc>, window_params = [{transform_indices = @transform_0, window_bounds = array<i64: 1, 3, 64>}, {pipeline_mode = #tpu.pipeline_mode<synchronous>, transform_indices = @transform_1, window_bounds = array<i64: 3, 64>}]} {
    %c0 = arith.constant 0 : index
    %c0_0 = arith.constant 0 : index
    %c0_1 = arith.constant 0 : index
    %0 = vector.load %arg1[%c0, %c0_0, %c0_1] : memref<1x3x64xf32, #tpu.memory_space<vmem>>, vector<1x3x64xf32>
    %1 = vector.shape_cast %0 : vector<1x3x64xf32> to vector<3x64xf32>
    %c0_i32 = arith.constant 0 : i32
    %2 = arith.cmpi eq, %arg0, %c0_i32 : i32
    %3 = arith.extui %2 : i1 to i32
    %c0_i32_2 = arith.constant 0 : i32
    %4 = arith.cmpi ne, %3, %c0_i32_2 : i32
    scf.if %4 {
      %c0_6 = arith.constant 0 : index
      %c0_7 = arith.constant 0 : index
      %11 = vector.load %arg3[%c0_6, %c0_7] : memref<3x64xf32, #tpu.memory_space<vmem>>, vector<3x64xf32>
      tpu.vector_store %arg3[%c0_6, %c0_7], %1 {strides = array<i32>} : memref<3x64xf32, #tpu.memory_space<vmem>>, vector<3x64xf32>,
      %c0_8 = arith.constant 0 : index
      %c0_9 = arith.constant 0 : index
      %12 = vector.load %arg4[%c0_8, %c0_9] : memref<3x64xf32, #tpu.memory_space<vmem>>, vector<3x64xf32>
      tpu.vector_store %arg4[%c0_8, %c0_9], %1 {strides = array<i32>} : memref<3x64xf32, #tpu.memory_space<vmem>>, vector<3x64xf32>,
    } else {
    }
    %c0_i32_3 = arith.constant 0 : i32
    %5 = arith.cmpi sgt, %arg0, %c0_i32_3 : i32
    %6 = arith.extui %5 : i1 to i32
    %c0_i32_4 = arith.constant 0 : i32
    %7 = arith.cmpi ne, %6, %c0_i32_4 : i32
    scf.if %7 {
      %c0_6 = arith.constant 0 : index
      %c0_7 = arith.constant 0 : index
      %11 = vector.load %arg3[%c0_6, %c0_7] : memref<3x64xf32, #tpu.memory_space<vmem>>, vector<3x64xf32>
      %12 = arith.addf %11, %1 : vector<3x64xf32>
      %c0_8 = arith.constant 0 : index
      %c0_9 = arith.constant 0 : index
      %13 = vector.load %arg3[%c0_8, %c0_9] : memref<3x64xf32, #tpu.memory_space<vmem>>, vector<3x64xf32>
      tpu.vector_store %arg3[%c0_8, %c0_9], %12 {strides = array<i32>} : memref<3x64xf32, #tpu.memory_space<vmem>>, vector<3x64xf32>,
      %c0_10 = arith.constant 0 : index
      %c0_11 = arith.constant 0 : index
      %14 = vector.load %arg4[%c0_10, %c0_11] : memref<3x64xf32, #tpu.memory_space<vmem>>, vector<3x64xf32>
      %15 = arith.maximumf %14, %1 : vector<3x64xf32>
      %c0_12 = arith.constant 0 : index
      %c0_13 = arith.constant 0 : index
      %16 = vector.load %arg4[%c0_12, %c0_13] : memref<3x64xf32, #tpu.memory_space<vmem>>, vector<3x64xf32>
      tpu.vector_store %arg4[%c0_12, %c0_13], %15 {strides = array<i32>} : memref<3x64xf32, #tpu.memory_space<vmem>>, vector<3x64xf32>,
    } else {
    }
    %c3_i32 = arith.constant 3 : i32
    %8 = arith.cmpi eq, %arg0, %c3_i32 : i32
    %9 = arith.extui %8 : i1 to i32
    %c0_i32_5 = arith.constant 0 : i32
    %10 = arith.cmpi ne, %9, %c0_i32_5 : i32
    scf.if %10 {
      %c0_6 = arith.constant 0 : index
      %c0_7 = arith.constant 0 : index
      %11 = vector.load %arg3[%c0_6, %c0_7] : memref<3x64xf32, #tpu.memory_space<vmem>>, vector<3x64xf32>
      %cst = arith.constant 2.500000e-01 : f32
      %12 = vector.broadcast %cst : f32 to vector<3x64xf32>
      %13 = arith.mulf %11, %12 : vector<3x64xf32>
      %c0_8 = arith.constant 0 : index
      %c0_9 = arith.constant 0 : index
      %14 = vector.load %arg4[%c0_8, %c0_9] : memref<3x64xf32, #tpu.memory_space<vmem>>, vector<3x64xf32>
      %15 = arith.addf %13, %14 : vector<3x64xf32>
      %cst_10 = arith.constant 5.000000e-01 : f32
      %16 = vector.broadcast %cst_10 : f32 to vector<3x64xf32>
      %17 = arith.mulf %15, %16 : vector<3x64xf32>
      %c0_11 = arith.constant 0 : index
      %c0_12 = arith.constant 0 : index
      %18 = vector.load %arg2[%c0_11, %c0_12] : memref<3x64xf32, #tpu.memory_space<vmem>>, vector<3x64xf32>
      tpu.vector_store %arg2[%c0_11, %c0_12], %17 {strides = array<i32>} : memref<3x64xf32, #tpu.memory_space<vmem>>, vector<3x64xf32>,
    } else {
    }
    return
  }
  func.func @transform_0(%arg0: i32) -> (i32, i32, i32) {
    %c0_i32 = arith.constant 0 : i32
    %c0_i32_0 = arith.constant 0 : i32
    %c0_i32_1 = arith.constant 0 : i32
    return %arg0, %c0_i32, %c0_i32_0 : i32, i32, i32
  }
  func.func @transform_1(%arg0: i32) -> (i32, i32) {
    %c0_i32 = arith.constant 0 : i32
    %c0_i32_0 = arith.constant 0 : i32
    %c0_i32_1 = arith.constant 0 : i32
    return %c0_i32, %c0_i32_0 : i32, i32
  }
}

</mosaic_0001>

<llo_original>
// kernel: tpu_custom_call.1
$region0: #{tpu_custom_call.1}
  #allocation0 [shape = 'u32[]', space=smem, size = 0x4, offset = 0x4, fixed_abs, tag = 'smem constant byte address 0x4 - core index']
  #allocation1 [shape = 'u32[144,128]{1,0:T(1,128)}', space=vmem, size = 0x12000, scoped, tag = 'internal scratch']
  #allocation2 [shape = 'f32[3,64]{1,0:T(4,128)}', space=vmem, size = 0x800, scoped, tag = 'scratch operand']
  #allocation3 [shape = 'f32[3,64]{1,0:T(4,128)}', space=vmem, size = 0x800, scoped, tag = 'scratch operand']
  %s0 = inlined_call_operand.vmem [shape: f32[4,3,64], index: 0, kind: input, shape index: {}]
  %s1 = inlined_call_operand.hbm [shape: f32[3,64], index: 1, kind: output, shape index: {}]
  %s2 = sld [smem:[#allocation0]]
  $region49: #{tpu_custom_call.1} parent=0
    _
  %s4 = ssub.s32 1, %s2
  %s5 = scalar_select 0, %s4, %s2
  $region1: #{tpu_custom_call.1} parent=0
    #allocation4 [shape = 'u8[2048]{0}', space=vmem, size = 0x800, scoped, tag = 'output window, operand 0, single buffered']
    #allocation5 [shape = 's32[2]{0}', space=sflag, size = 0x8, scoped, tag = 'scoped memory for tpu_custom_call.1']
    %6 = vsyncpa [#allocation5], 0
    loop: start=0, step=1, limit=6
    $region2: #{tpu_custom_call.1} parent=1 // loop_pre_header
      _
    $region3: #{tpu_custom_call.1} parent=1 // loop_header
      %s8 = sphi 0, %s12
      %p9 = scmp.ge.s32.totalorder %s8, 6
      %s18 = sphi 0, %s20
      %s21 = sphi 0, %s18
      %s22 = sphi 0, %s21
      %s38 = sphi 0, %s22
      %s42 = sphi 0, %s42
      %s44 = sphi 0, %s42
      %s45 = sphi 0, %s44
      %s59 = sphi 0, %s45
    $region4: #{tpu_custom_call.1} parent=1 // loop_header_branch
      %11 = sbr.rel (%p9) target = $region8
    $region5: #{tpu_custom_call.1} parent=1 // loop_body
      %s13 = ssub.s32 %s8, 1
      %s14 = ssub.s32 %s8, 2
      %s15 = sadd.s32 %s8, 1
      %s16 = ssub.s32 %s8, %s15
      %p17 = scmp.eq.s32.totalorder %s16, 0
      %s19 = sadd.s32 %s18, 1
      %s20 = scalar_select %p17, %s18, %s19
      %p23 = pneg %p17
      %p24 = scmp.eq.s32.totalorder %s8, 3
      %p25 = por %p23, %p24
      %p26 = scmp.ne.s32.totalorder %s18, %s21
      %p27 = scmp.eq.s32.totalorder %s8, 0
      %p28 = por %p26, %p27
      %p29 = scmp.ne.s32.totalorder %s18, %s21
      %p30 = scmp.eq.s32.totalorder %s13, 3
      %p31 = por %p29, %p30
      %p32 = scmp.ne.s32.totalorder %s21, %s22
      %p33 = scmp.eq.s32.totalorder %s13, 0
      %p34 = por %p32, %p33
      %p35 = scmp.ne.s32.totalorder %s21, %s22
      %p36 = scmp.eq.s32.totalorder %s14, 3
      %p37 = por %p35, %p36
      %p39 = scmp.ne.s32.totalorder %s22, %s38
      %p40 = scmp.eq.s32.totalorder %s14, 0
      %p41 = por %p39, %p40
      %s43 = sadd.s32 %s42, 1
      %p46 = scmp.eq.s32.totalorder %s8, 3
      %p47 = scmp.ne.s32.totalorder %s42, %s44
      %p48 = scmp.eq.s32.totalorder %s8, 0
      %p49 = por %p47, %p48
      %p50 = scmp.ne.s32.totalorder %s42, %s44
      %p51 = scmp.eq.s32.totalorder %s13, 3
      %p52 = por %p50, %p51
      %p53 = scmp.ne.s32.totalorder %s44, %s45
      %p54 = scmp.eq.s32.totalorder %s13, 0
      %p55 = por %p53, %p54
      %p56 = scmp.ne.s32.totalorder %s44, %s45
      %p57 = scmp.eq.s32.totalorder %s14, 3
      %p58 = por %p56, %p57
      %p60 = scmp.ne.s32.totalorder %s45, %s59
      %p61 = scmp.eq.s32.totalorder %s14, 0
      %p62 = por %p60, %p61
      %p63 = scmp.le.s32.totalorder 1, %s8
      %p64 = scmp.lt.s32.totalorder %s8, 5
      %p65 = pnand %p63, %p64
      %p66 = pneg %p65
      // Predicated region
      $region9: #{tpu_custom_call.1} parent=5 // pred_check
        _
      $region10: #{tpu_custom_call.1} parent=5 // pred_check_branch
        %68 = sbr.rel (%p65) target = $region12
      $region11: #{tpu_custom_call.1} parent=5 // pred_region
        %s69 = ssub.s32 %s8, 1
      $region12: #{tpu_custom_call.1} parent=5 // pred_fallthru
        _
      %p70 = scmp.lt.s32.totalorder %s8, 4
      // Predicated region
      $region13: #{tpu_custom_call.1} parent=5 // pred_check
        %p71 = pneg %p70
      $region14: #{tpu_custom_call.1} parent=5 // pred_check_branch
        %73 = sbr.rel (%p71) target = $region16
      $region15: #{tpu_custom_call.1} parent=5 // pred_region
        // Predicated region
        $region17: #{tpu_custom_call.1} parent=15 // pred_check
          %p74 = pneg %p28
        $region18: #{tpu_custom_call.1} parent=15 // pred_check_branch
          %76 = sbr.rel (%p74) target = $region20
        $region19: #{tpu_custom_call.1} parent=15 // pred_region
          %p77 = scmp.lt.s32.totalorder %s8, 3
          %s78 = scalar_select %p77, %s8, 3
          %s79 = smul.addr %s78, 4
          %s80 = scalar_lea.vmem %s0, %s79
        $region20: #{tpu_custom_call.1} parent=15 // pred_fallthru
          _
      $region16: #{tpu_custom_call.1} parent=5 // pred_fallthru
        _
      %p81 = scmp.le.s32.totalorder 1, %s8
      %p82 = scmp.lt.s32.totalorder %s8, 5
      %p83 = pnand %p81, %p82
      %p84 = pneg %p83
      // Predicated region
      $region21: #{tpu_custom_call.1} parent=5 // pred_check
        _
      $region22: #{tpu_custom_call.1} parent=5 // pred_check_branch
        %86 = sbr.rel (%p83) target = $region24
      $region23: #{tpu_custom_call.1} parent=5 // pred_region
        %s87 = ssub.s32 %s8, 1
        %p88 = scmp.lt.s32.totalorder %s13, 3
        %s89 = scalar_select %p88, %s13, 3
        %s90 = smul.addr %s89, 4
        %s91 = scalar_lea.vmem %s0, %s90
        %p92 = pneg %p34
        %p93 = pneg %p31
        %p94 = pneg %p55
        %p95 = pneg %p52
        %p96 = scmp.lt.s32.totalorder %s13, 3
        %s97 = scalar_select %p96, %s13, 3
        %s98 = smul.addr %s97, 4
        %s99 = scalar_lea.vmem %s0, %s98
        %v100 = vld [vmem:[%s99] sm:$0x7]
        %p101 = scmp.eq.s32.totalorder %s13, 0
        // Predicated region
        $region25: #{tpu_custom_call.1} parent=23 // pred_check
          %p102 = pneg %p101
        $region26: #{tpu_custom_call.1} parent=23 // pred_check_branch
          %104 = sbr.rel (%p102) target = $region28
        $region27: #{tpu_custom_call.1} parent=23 // pred_region
          %vm105 = vcmask 518144
          %106 = vst.msk [vmem:[#allocation2] sm:$0x7] %vm105, %v100
          %107 = vst.msk [vmem:[#allocation3] sm:$0x7] %vm105, %v100
        $region28: #{tpu_custom_call.1} parent=23 // pred_fallthru
          _
        %p108 = scmp.gt.s32.totalorder %s13, 0
        // Predicated region
        $region29: #{tpu_custom_call.1} parent=23 // pred_check
          %p109 = pneg %p108
        $region30: #{tpu_custom_call.1} parent=23 // pred_check_branch
          %111 = sbr.rel (%p109) target = $region32
        $region31: #{tpu_custom_call.1} parent=23 // pred_region
          %v112 = vld [vmem:[#allocation2] sm:$0x7]
          %v113 = vadd.f32 %v112, %v100
          %vm114 = vcmask 518144
          %115 = vst.msk [vmem:[#allocation2] sm:$0x7] %vm114, %v113
          %v116 = vld [vmem:[#allocation3] sm:$0x7]
          %v117 = vmax.f32 %v116, %v100
          %118 = vst.msk [vmem:[#allocation3] sm:$0x7] %vm114, %v117
        $region32: #{tpu_custom_call.1} parent=23 // pred_fallthru
          _
        %p119 = scmp.eq.s32.totalorder %s13, 3
        // Predicated region
        $region33: #{tpu_custom_call.1} parent=23 // pred_check
          %p120 = pneg %p119
        $region34: #{tpu_custom_call.1} parent=23 // pred_check_branch
          %122 = sbr.rel (%p120) target = $region36
        $region35: #{tpu_custom_call.1} parent=23 // pred_region
          %v123 = vld [vmem:[#allocation2] sm:$0x7]
          %v124 = vmul.f32 %v123, 0.25
          %v125 = vld [vmem:[#allocation3] sm:$0x7]
          %v126 = vadd.f32 %v124, %v125
          %v127 = vmul.f32 %v126, 0.5
          %vm128 = vcmask 518144
          %129 = vst.msk [vmem:[#allocation4] sm:$0x7] %vm128, %v127
        $region36: #{tpu_custom_call.1} parent=23 // pred_fallthru
          _
        // Predicated region
        $region37: #{tpu_custom_call.1} parent=23 // pred_check
          %p130 = pneg %p52
        $region38: #{tpu_custom_call.1} parent=23 // pred_check_branch
          %132 = sbr.rel (%p130) target = $region40
        $region39: #{tpu_custom_call.1} parent=23 // pred_region
          %s134 = ssub.s32 64, 64
          %135 = vsyncadd [#allocation5], %s134
          %s137 = sshll.u32 [#allocation4], 4
          %s138 = int_to_ptr.vmem [resolvable:$true] %s137
          %140 = dma.vmem_to_hbm [thread:$0]  %s138, 64, %s1, [#allocation5]
        $region40: #{tpu_custom_call.1} parent=23 // pred_fallthru
          _
        // Predicated region
        $region41: #{tpu_custom_call.1} parent=23 // pred_check
          %p141 = pneg %p52
        $region42: #{tpu_custom_call.1} parent=23 // pred_check_branch
          %143 = sbr.rel (%p141) target = $region44
        $region43: #{tpu_custom_call.1} parent=23 // pred_region
          %144 = dma.done [#allocation5], 64
        $region44: #{tpu_custom_call.1} parent=23 // pred_fallthru
          _
      $region24: #{tpu_custom_call.1} parent=5 // pred_fallthru
        _
      %p145 = scmp.le.s32.totalorder 2, %s8
      // Predicated region
      $region45: #{tpu_custom_call.1} parent=5 // pred_check
        %p146 = pneg %p145
      $region46: #{tpu_custom_call.1} parent=5 // pred_check_branch
        %148 = sbr.rel (%p146) target = $region48
      $region47: #{tpu_custom_call.1} parent=5 // pred_region
        %s149 = ssub.s32 %s8, 2
      $region48: #{tpu_custom_call.1} parent=5 // pred_fallthru
        _
    $region6: #{tpu_custom_call.1} parent=1 // loop_footer
      %s12 = sadd.s32 1, %s8
    $region7: #{tpu_custom_call.1} parent=1 // loop_footer_branch
      %7 = sbr.rel target = $region3
    $region8: #{tpu_custom_call.1} parent=1 // loop_exit
      _
    %150 = vsyncpa [#allocation5], 1
    %s151 = scalar_lea.sflag [#allocation5], 1
    %152 = vsyncpa %s151, 1

</llo_original>
